<compile_context>
chip_gen: v5e
topology: v5e:2x2
jax: 0.10.0
libtpu: 0.0.40
codegen_flags: <defaults>
</compile_context>

<pallas_src>
import jax
import jax.numpy as jnp
from jax.experimental import pallas as pl
from jax.experimental.pallas import tpu as pltpu


# ----------------------------- Pallas kernel ------------------------------ #
def _pwl_encoding_kernel(x_ref, rep_ref, params_ref, out_ref):
    # x_ref:      (T, Ft)                 input rows (one feature tile)
    # rep_ref:    (n_split*Ft, Ft*B) bf16 0/1 replication matrix (diag block)
    # params_ref: (4, Ft*B) f32           rows = [edges, scale=1/width, hi, lo]
    # out_ref:    (T, Ft*B)               lane-dense flattened output
    x = x_ref[...].astype(jnp.float32)              # (T, Ft)
    tile_f = x.shape[1]
    n_split = rep_ref.shape[0] // tile_f

    # Dekker-style split of x into n_split bf16 chunks; each chunk times the
    # 0/1 matrix is exact (every rep column holds exactly one 1 per chunk),
    # and the MXU's f32 accumulation re-sums the chunks, recovering x to
    # <= 1 ulp.  Do NOT fold scale/edges into rep: exactness relies on the
    # products being multiplications by 1.0.
    chunks = []
    r = x
    for i in range(n_split):
        c = r.astype(jnp.bfloat16)
        chunks.append(c)
        if i + 1 < n_split:
            r = r - c.astype(jnp.float32)
    x_cat = jnp.concatenate(chunks, axis=1)         # (T, n_split*Ft) bf16

    # Single fused MXU dot: replicate each feature column into its n_bins-wide
    # slot (K = n_split*Ft instead of 3 separate K = Ft dots).
    x_rep = jnp.dot(x_cat, rep_ref[...], preferred_element_type=jnp.float32)

    params = params_ref[...]                        # (4, Ft*B) f32
    edges = params[0:1, :]
    scale = params[1:2, :]
    hi_bound = params[2:3, :]
    lo_bound = params[3:4, :]

    z = (x_rep - edges) * scale                     # (x - e) * (1/w): no divide
    z = jnp.maximum(jnp.minimum(z, hi_bound), lo_bound)   # clamp via bound tables
    out_ref[...] = z.astype(out_ref.dtype)


# ------------------------------ parameter prep ----------------------------- #
def make_pwl_params(bins, dtype=jnp.float32):
    """Replicates _PiecewiseLinearEncodingImpl.__init__ buffer construction and
    derives the kernel's precomputed tables.

    Padded bins (j >= count) keep the module's behaviour: value 0 / NaN and no
    clamping; downstream masking is the caller's responsibility (as in torch).
    """
    assert len(bins) > 0
    n_features = len(bins)
    max_n_edges = max(int(b.shape[0]) for b in bins)
    n_bins = max_n_edges - 1

    rows = []
    for b in bins:
        b = jnp.asarray(b, dtype)
        assert b.ndim == 1 and b.shape[0] >= 2
        pad = jnp.full((max_n_edges - b.shape[0],), jnp.inf, dtype=dtype)
        rows.append(jnp.concatenate([b, pad])[:max_n_edges])
    edges_full = jnp.stack(rows)                    # (F, max_n_edges)
    edges = edges_full[:, :-1]                      # (F, n_bins)
    width = jnp.diff(edges_full, axis=1)            # (F, n_bins)
    scale = 1.0 / width                             # 1/inf = 0, 1/nan = nan

    counts = tuple(int(b.shape[0]) - 1 for b in bins)
    c = jnp.asarray(counts)[:, None]
    j = jnp.arange(n_bins)[None, :]
    hi_applies = (c > 1) & (j <= c - 2)             # clamp_max(1.0)
    lo_applies = (c > 1) & (j >= 1) & (j <= c - 1)  # clamp_min(0.0)
    hi_bound = jnp.where(hi_applies, 1.0, jnp.inf).astype(dtype)
    lo_bound = jnp.where(lo_applies, 0.0, -jnp.inf).astype(dtype)

    params = jnp.stack([edges.reshape(-1), scale.reshape(-1),
                        hi_bound.reshape(-1), lo_bound.reshape(-1)])  # (4, F*B)

    return {
        "params": params,
        "edges": edges, "width": width, "counts": counts,
        "n_features": n_features, "n_bins": n_bins,
    }


def _make_rep_tile(tile_f, n_bins, n_split, dtype=jnp.bfloat16):
    """0/1 replication matrix for ONE feature tile, stacked n_split times along
    the contraction axis: rep3[s*tile_f + f, f*n_bins + j] = 1.
    Identical for every feature tile (block-diagonal structure), so the kernel
    reuses a single (n_split*tile_f, tile_f*n_bins) block."""
    fb = tile_f * n_bins
    col = jnp.arange(fb)[None, :]
    row = jnp.arange(tile_f)[:, None]
    rep = (col // n_bins == row).astype(dtype)       # (tile_f, fb)
    return jnp.concatenate([rep] * n_split, axis=0)  # (n_split*tile_f, fb)


# ------------------------------ JAX wrapper ------------------------------- #
def piecewise_linear_encoding(x, params, n_bins, *, n_split=3, out_dtype=None,
                              tile_f=None, max_tile_n=1024, target_row_steps=8,
                              interpret=False):
    """Forward pass of _PiecewiseLinearEncodingImpl for 2-D x of shape (N, F).

    out_dtype=jnp.bfloat16 roughly halves the (dominant) HBM writeback of this
    bandwidth-bound op at the cost of ~8 mantissa bits vs the f32 reference.
    n_split=2 trades ~2^-17 relative input error for fewer MXU pushes (v5e).
    """
    N, F = x.shape
    FB = F * n_bins
    assert params.shape == (4, FB)
    assert n_split in (2, 3)
    out_dtype = x.dtype if out_dtype is None else jnp.dtype(out_dtype)
    out_isz = jnp.dtype(out_dtype).itemsize
    x_isz = jnp.dtype(x.dtype).itemsize

    # --- generation-aware VMEM budget (v7x has only 64 MiB per TensorCore) ---
    try:
        vmem_phys = int(getattr(pltpu.get_tpu_info(), "vmem_capacity_bytes",
                                64 * 1024 * 1024))
    except Exception:
        vmem_phys = 64 * 1024 * 1024          # conservative (v7x per-TC size)
    if vmem_phys < 16 * 1024 * 1024:
        vmem_phys = 64 * 1024 * 1024
    vmem_cap = (vmem_phys * 3) // 4           # leave 25% headroom (48 MiB on v7x)

    # --- feature tiling (block-diagonal replication; linear-in-F VMEM) ---
    if tile_f is None:
        if F <= 128:
            tile_f = F
        else:
            big_ok = n_split * 256 * 256 * n_bins * 2 <= vmem_cap // 8
            tile_f = 256 if (F >= 256 and big_ok) else 128
    if tile_f != F:
        assert tile_f % 128 == 0, "feature tiles must be lane-aligned (x128)"
    tile_fb = tile_f * n_bins
    grid_f = pl.cdiv(F, tile_f)

    rep = _make_rep_tile(tile_f, n_bins, n_split)     # (n_split*tile_f, tile_fb)

    # --- batch tile: VMEM budget incl. f32 intermediates, plus a pipeline-depth
    #     cap so the row grid has ~target_row_steps steps ---
    rep_bytes = int(rep.size) * 2
    params_blk_bytes = 4 * tile_fb * 4
    fixed = 2 * (rep_bytes + params_blk_bytes) + (4 << 20)   # dbl-buffered consts + scratch
    per_row = (2 * tile_fb * out_isz            # output block (double-buffered)
               + 2 * tile_f * x_isz             # input block (double-buffered)
               + 2 * tile_fb * 4                # f32 intermediates (x_rep, z)
               + tile_f * (4 + 2 * n_split))    # f32 x copy + bf16 split chunks
    tile_n = max(8, (vmem_cap - fixed) // per_row)
    step_cap = -(-N // target_row_steps)        # ceil(N / target_row_steps)
    step_cap = max(8, ((step_cap + 7) // 8) * 8)
    tile_n = int(min(tile_n, max_tile_n, step_cap))
    tile_n = max(8, (tile_n // 8) * 8)
    grid_n = pl.cdiv(N, tile_n)                 # partial last block is masked by Pallas

    blk_bytes = fixed + tile_n * per_row
    vmem_limit = int(min(vmem_cap, max(32 * 1024 * 1024, blk_bytes)))

    out_flat = pl.pallas_call(
        _pwl_encoding_kernel,
        out_shape=jax.ShapeDtypeStruct((N, FB), out_dtype),
        grid_spec=pltpu.PrefetchScalarGridSpec(
            num_scalar_prefetch=0,
            grid=(grid_n, grid_f),
            in_specs=[
                pl.BlockSpec((tile_n, tile_f), lambda i, fi: (i, fi)),          # x rows
                pl.BlockSpec((n_split * tile_f, tile_fb), lambda i, fi: (0, 0)),  # rep (diag block)
                pl.BlockSpec((4, tile_fb), lambda i, fi: (0, fi)),               # edges/scale/bounds
            ],
            out_specs=pl.BlockSpec((tile_n, tile_fb), lambda i, fi: (i, fi)),
        ),
        compiler_params=pltpu.CompilerParams(
            dimension_semantics=("parallel", "parallel"),
            vmem_limit_bytes=vmem_limit,
        ),
        interpret=interpret,
    )(x, rep, params)

    return out_flat.reshape(N, F, n_bins)        # free (row-major) reshape


# --------------------- pure-JAX reference (module math) -------------------- #
def _reference_module_forward(x, edges, width, counts):
    z = (x[..., None] - edges) / width
    n_bins = z.shape[-1]
    if n_bins > 1:
        c = jnp.asarray(counts)[:, None]
        j = jnp.arange(n_bins)[None, :]
        hi = (c > 1) & (j <= c - 2)
        lo = (c > 1) & (j >= 1) & (j <= c - 1)
        z = jnp.where(hi[None], jnp.minimum(z, 1.0), z)
        z = jnp.where(lo[None], jnp.maximum(z, 0.0), z)
    return z


if __name__ == "__main__":
    key = jax.random.PRNGKey(0)
    k1, k2, k3 = jax.random.split(key, 3)

    # --- Test 1: same bin count, FB = 128 (one lane width), N not a multiple
    #     of the tile (exercises the no-pad / masked-partial-block path).
    n_features, n_edges = 16, 9
    bins = [jnp.linspace(-1.0 + 0.05 * i, 1.0 + 0.05 * i, n_edges, dtype=jnp.float32)
            for i in range(n_features)]
    p = make_pwl_params(bins)
    x = jax.random.normal(k1, (300, n_features), dtype=jnp.float32) * 1.5
    out = jax.block_until_ready(
        piecewise_linear_encoding(x, p["params"], p["n_bins"]))
    ref = _reference_module_forward(x, p["edges"], p["width"], p["counts"])
    assert out.shape == (300, n_features, p["n_bins"])
    assert jnp.allclose(out, ref, atol=1e-5, rtol=1e-5), "test1 mismatch"

    # --- Test 2: mixed bin counts (inf-padded bins -> 0/NaN, unclamped, same
    #     as the torch buffers; compared with equal_nan).
    edge_counts = [3, 5, 9, 2, 9, 6, 4]
    bins2 = [jnp.linspace(-2.0, 2.0, ec, dtype=jnp.float32) for ec in edge_counts]
    p2 = make_pwl_params(bins2)
    x2 = jax.random.normal(k2, (200, len(bins2)), dtype=jnp.float32)
    out2 = jax.block_until_ready(
        piecewise_linear_encoding(x2, p2["params"], p2["n_bins"]))
    ref2 = _reference_module_forward(x2, p2["edges"], p2["width"], p2["counts"])
    assert out2.shape == (200, len(bins2), p2["n_bins"])
    assert jnp.allclose(out2, ref2, atol=1e-5, rtol=1e-5, equal_nan=True), "test2 mismatch"

    # --- Test 3: many features -> block-diagonal feature tiling (tile_f=128,
    #     two feature tiles on the second grid axis).
    n_features3, n_edges3 = 256, 5
    bins3 = [jnp.linspace(-2.0 + 0.01 * i, 2.0 + 0.01 * i, n_edges3, dtype=jnp.float32)
             for i in range(n_features3)]
    p3 = make_pwl_params(bins3)
    x3 = jax.random.normal(k3, (128, n_features3), dtype=jnp.float32)
    out3 = jax.block_until_ready(
        piecewise_linear_encoding(x3, p3["params"], p3["n_bins"], tile_f=128))
    ref3 = _reference_module_forward(x3, p3["edges"], p3["width"], p3["counts"])
    assert out3.shape == (128, n_features3, p3["n_bins"])
    assert jnp.allclose(out3, ref3, atol=1e-5, rtol=1e-5), "test3 mismatch"

    print("KERNEL_OK")
</pallas_src>

<mosaic_0001>
module attributes {stable_mosaic.version = 11 : i64} {
  func.func @_pwl_encoding_kernel(%arg0: i32, %arg1: i32, %arg2: memref<40x16xf32, #tpu.memory_space<vmem>>, %arg3: memref<48x128xbf16, #tpu.memory_space<vmem>>, %arg4: memref<4x128xf32, #tpu.memory_space<vmem>>, %arg5: memref<40x128xf32, #tpu.memory_space<vmem>>) attributes {dimension_semantics = [#tpu.dimension_semantics<parallel>, #tpu.dimension_semantics<parallel>], iteration_bounds = array<i64: 8, 1>, scalar_prefetch = 0 : i64, scratch_operands = 0 : i64, tpu.core_type = #tpu.core_type<tc>, window_params = [{transform_indices = @transform_0, window_bounds = array<i64: 40, 16>}, {pipeline_mode = #tpu.pipeline_mode<synchronous>, transform_indices = @transform_1, window_bounds = array<i64: 48, 128>}, {transform_indices = @transform_2, window_bounds = array<i64: 4, 128>}, {transform_indices = @transform_3, window_bounds = array<i64: 40, 128>}]} {
    %c0 = arith.constant 0 : index
    %c0_0 = arith.constant 0 : index
    %0 = vector.load %arg2[%c0, %c0_0] : memref<40x16xf32, #tpu.memory_space<vmem>>, vector<40x16xf32>
    %1 = arith.truncf %0 : vector<40x16xf32> to vector<40x16xbf16>
    %2 = arith.extf %1 : vector<40x16xbf16> to vector<40x16xf32>
    %3 = arith.subf %0, %2 : vector<40x16xf32>
    %4 = arith.truncf %3 : vector<40x16xf32> to vector<40x16xbf16>
    %5 = arith.extf %4 : vector<40x16xbf16> to vector<40x16xf32>
    %6 = arith.subf %3, %5 : vector<40x16xf32>
    %7 = arith.truncf %6 : vector<40x16xf32> to vector<40x16xbf16>
    %8 = tpu.concatenate %1, %4, %7 in 1 : vector<40x16xbf16>, vector<40x16xbf16>, vector<40x16xbf16> -> vector<40x48xbf16>
    %c0_1 = arith.constant 0 : index
    %c0_2 = arith.constant 0 : index
    %9 = vector.load %arg3[%c0_1, %c0_2] : memref<48x128xbf16, #tpu.memory_space<vmem>>, vector<48x128xbf16>
    %cst = arith.constant dense<0.000000e+00> : vector<40x128xf32>
    %10 = tpu.matmul %8, %9, %cst {dimension_numbers = #tpu.dot_dimension_numbers<[1], [0], [0], [1], [0, 0, 1, 1], [], []>} : vector<40x48xbf16>, vector<48x128xbf16>, vector<40x128xf32> -> vector<40x128xf32>
    %c0_3 = arith.constant 0 : index
    %c0_4 = arith.constant 0 : index
    %11 = vector.load %arg4[%c0_3, %c0_4] : memref<4x128xf32, #tpu.memory_space<vmem>>, vector<4x128xf32>
    %12 = vector.extract_strided_slice %11 {offsets = [0, 0], sizes = [1, 128], strides = [1, 1]} : vector<4x128xf32> to vector<1x128xf32>
    %13 = vector.extract_strided_slice %11 {offsets = [1, 0], sizes = [1, 128], strides = [1, 1]} : vector<4x128xf32> to vector<1x128xf32>
    %14 = vector.extract_strided_slice %11 {offsets = [2, 0], sizes = [1, 128], strides = [1, 1]} : vector<4x128xf32> to vector<1x128xf32>
    %15 = vector.extract_strided_slice %11 {offsets = [3, 0], sizes = [1, 128], strides = [1, 1]} : vector<4x128xf32> to vector<1x128xf32>
    %16 = vector.broadcast %12 : vector<1x128xf32> to vector<40x128xf32>
    %17 = arith.subf %10, %16 : vector<40x128xf32>
    %18 = vector.broadcast %13 : vector<1x128xf32> to vector<40x128xf32>
    %19 = arith.mulf %17, %18 : vector<40x128xf32>
    %20 = vector.broadcast %14 : vector<1x128xf32> to vector<40x128xf32>
    %21 = arith.minimumf %19, %20 : vector<40x128xf32>
    %22 = vector.broadcast %15 : vector<1x128xf32> to vector<40x128xf32>
    %23 = arith.maximumf %21, %22 : vector<40x128xf32>
    %c0_5 = arith.constant 0 : index
    %c0_6 = arith.constant 0 : index
    %24 = vector.load %arg5[%c0_5, %c0_6] : memref<40x128xf32, #tpu.memory_space<vmem>>, vector<40x128xf32>
    tpu.vector_store %arg5[%c0_5, %c0_6], %23 {strides = array<i32>} : memref<40x128xf32, #tpu.memory_space<vmem>>, vector<40x128xf32>,
    return
  }
  func.func @transform_0(%arg0: i32, %arg1: i32) -> (i32, i32) {
    %c0_i32 = arith.constant 0 : i32
    return %arg0, %arg1 : i32, i32
  }
  func.func @transform_1(%arg0: i32, %arg1: i32) -> (i32, i32) {
    %c0_i32 = arith.constant 0 : i32
    %c0_i32_0 = arith.constant 0 : i32
    %c0_i32_1 = arith.constant 0 : i32
    return %c0_i32, %c0_i32_0 : i32, i32
  }
  func.func @transform_2(%arg0: i32, %arg1: i32) -> (i32, i32) {
    %c0_i32 = arith.constant 0 : i32
    %c0_i32_0 = arith.constant 0 : i32
    return %c0_i32, %arg1 : i32, i32
  }
  func.func @transform_3(%arg0: i32, %arg1: i32) -> (i32, i32) {
    %c0_i32 = arith.constant 0 : i32
    return %arg0, %arg1 : i32, i32
  }
}

</mosaic_0001>

<llo_original>
// kernel: tpu_custom_call.1
$region0: #{tpu_custom_call.1}
  #allocation0 [shape = 'u32[]', space=smem, size = 0x4, offset = 0x4, fixed_abs, tag = 'smem constant byte address 0x4 - core index']
  #allocation1 [shape = 'u32[72,128]{1,0:T(1,128)}', space=vmem, size = 0x9000, scoped, tag = 'internal scratch']
  %s0 = inlined_call_operand.vmem [shape: f32[300,16], index: 0, kind: input, shape index: {}]
  %s1 = inlined_call_operand.vmem [shape: bf16[48,128], index: 1, kind: input, shape index: {}]
  %s2 = inlined_call_operand.vmem [shape: f32[4,128], index: 2, kind: input, shape index: {}]
  %s3 = inlined_call_operand.hbm [shape: f32[300,128], index: 3, kind: output, shape index: {}]
  %s4 = sld [smem:[#allocation0]]
  $region45: #{tpu_custom_call.1} parent=0
    _
  %s6 = ssub.s32 1, %s4
  %s7 = scalar_select 0, %s6, %s4
  $region1: #{tpu_custom_call.1} parent=0
    #allocation2 [shape = 'u8[40960]{0}', space=vmem, size = 0xa000, scoped, tag = 'output window, operand 0']
    #allocation3 [shape = 's32[2]{0}', space=sflag, size = 0x8, scoped, tag = 'scoped memory for tpu_custom_call.1']
    %8 = vsyncpa [#allocation3], 0
    %s9 = scalar_lea.sflag [#allocation3], 1
    %10 = vsyncpa %s9, 0
    loop: start=0, step=1, limit=10
    $region2: #{tpu_custom_call.1} parent=1 // loop_pre_header
      _
    $region3: #{tpu_custom_call.1} parent=1 // loop_header
      %s12 = sphi 0, %s16
      %p13 = scmp.ge.s32.totalorder %s12, 10
      %s19 = sphi 0, %s31
      %s20 = sphi 0, %s27
      %s21 = sphi 0, %s19
      %s22 = sphi 0, %s20
      %s23 = sphi 0, %s21
      %s24 = sphi 0, %s22
      %s36 = sphi 0, %s38
      %s39 = sphi 0, %s36
      %s40 = sphi 0, %s39
      %s56 = sphi 0, %s40
      %s60 = sphi 0, %s60
      %s62 = sphi 0, %s60
      %s63 = sphi 0, %s62
      %s77 = sphi 0, %s63
      %s83 = sphi 0, %s85
      %s86 = sphi 0, %s83
      %s87 = sphi 0, %s86
      %s103 = sphi 0, %s87
      %s111 = sphi 0, %s113
      %s114 = sphi 0, %s111
      %s115 = sphi 0, %s114
      %s131 = sphi 0, %s115
    $region4: #{tpu_custom_call.1} parent=1 // loop_header_branch
      %15 = sbr.rel (%p13) target = $region8
    $region5: #{tpu_custom_call.1} parent=1 // loop_body
      %s17 = ssub.s32 %s12, 1
      %s18 = ssub.s32 %s12, 2
      %s25 = sadd.s32 1, %s20
      %p26 = scmp.ge.s32.totalorder %s25, 1
      %s27 = scalar_select %p26, 0, %s25
      %s28 = sadd.s32 1, %s19
      %s29 = scalar_select %p26, %s28, %s19
      %p30 = scmp.ge.s32.totalorder %s29, 8
      %s31 = scalar_select %p30, 0, %s29
      %s32 = ssub.s32 %s19, %s31
      %s33 = ssub.s32 %s20, %s27
      %s34 = sor.u32 %s32, %s33
      %p35 = scmp.eq.s32.totalorder %s34, 0
      %s37 = sadd.s32 %s36, 1
      %s38 = scalar_select %p35, %s36, %s37
      %p41 = pneg %p35
      %p42 = scmp.eq.s32.totalorder %s12, 7
      %p43 = por %p41, %p42
      %p44 = scmp.ne.s32.totalorder %s36, %s39
      %p45 = scmp.eq.s32.totalorder %s12, 0
      %p46 = por %p44, %p45
      %p47 = scmp.ne.s32.totalorder %s36, %s39
      %p48 = scmp.eq.s32.totalorder %s17, 7
      %p49 = por %p47, %p48
      %p50 = scmp.ne.s32.totalorder %s39, %s40
      %p51 = scmp.eq.s32.totalorder %s17, 0
      %p52 = por %p50, %p51
      %p53 = scmp.ne.s32.totalorder %s39, %s40
      %p54 = scmp.eq.s32.totalorder %s18, 7
      %p55 = por %p53, %p54
      %p57 = scmp.ne.s32.totalorder %s40, %s56
      %p58 = scmp.eq.s32.totalorder %s18, 0
      %p59 = por %p57, %p58
      %s61 = sadd.s32 %s60, 1
      %p64 = scmp.eq.s32.totalorder %s12, 7
      %p65 = scmp.ne.s32.totalorder %s60, %s62
      %p66 = scmp.eq.s32.totalorder %s12, 0
      %p67 = por %p65, %p66
      %p68 = scmp.ne.s32.totalorder %s60, %s62
      %p69 = scmp.eq.s32.totalorder %s17, 7
      %p70 = por %p68, %p69
      %p71 = scmp.ne.s32.totalorder %s62, %s63
      %p72 = scmp.eq.s32.totalorder %s17, 0
      %p73 = por %p71, %p72
      %p74 = scmp.ne.s32.totalorder %s62, %s63
      %p75 = scmp.eq.s32.totalorder %s18, 7
      %p76 = por %p74, %p75
      %p78 = scmp.ne.s32.totalorder %s63, %s77
      %p79 = scmp.eq.s32.totalorder %s18, 0
      %p80 = por %p78, %p79
      %s81 = ssub.s32 %s20, %s27
      %p82 = scmp.eq.s32.totalorder %s81, 0
      %s84 = sadd.s32 %s83, 1
      %s85 = scalar_select %p82, %s83, %s84
      %p88 = pneg %p82
      %p89 = scmp.eq.s32.totalorder %s12, 7
      %p90 = por %p88, %p89
      %p91 = scmp.ne.s32.totalorder %s83, %s86
      %p92 = scmp.eq.s32.totalorder %s12, 0
      %p93 = por %p91, %p92
      %p94 = scmp.ne.s32.totalorder %s83, %s86
      %p95 = scmp.eq.s32.totalorder %s17, 7
      %p96 = por %p94, %p95
      %p97 = scmp.ne.s32.totalorder %s86, %s87
      %p98 = scmp.eq.s32.totalorder %s17, 0
      %p99 = por %p97, %p98
      %p100 = scmp.ne.s32.totalorder %s86, %s87
      %p101 = scmp.eq.s32.totalorder %s18, 7
      %p102 = por %p100, %p101
      %p104 = scmp.ne.s32.totalorder %s87, %s103
      %p105 = scmp.eq.s32.totalorder %s18, 0
      %p106 = por %p104, %p105
      %s107 = ssub.s32 %s19, %s31
      %s108 = ssub.s32 %s20, %s27
      %s109 = sor.u32 %s107, %s108
      %p110 = scmp.eq.s32.totalorder %s109, 0
      %s112 = sadd.s32 %s111, 1
      %s113 = scalar_select %p110, %s111, %s112
      %p116 = pneg %p110
      %p117 = scmp.eq.s32.totalorder %s12, 7
      %p118 = por %p116, %p117
      %p119 = scmp.ne.s32.totalorder %s111, %s114
      %p120 = scmp.eq.s32.totalorder %s12, 0
      %p121 = por %p119, %p120
      %p122 = scmp.ne.s32.totalorder %s111, %s114
      %p123 = scmp.eq.s32.totalorder %s17, 7
      %p124 = por %p122, %p123
      %p125 = scmp.ne.s32.totalorder %s114, %s115
      %p126 = scmp.eq.s32.totalorder %s17, 0
      %p127 = por %p125, %p126
      %p128 = scmp.ne.s32.totalorder %s114, %s115
      %p129 = scmp.eq.s32.totalorder %s18, 7
      %p130 = por %p128, %p129
      %p132 = scmp.ne.s32.totalorder %s115, %s131
      %p133 = scmp.eq.s32.totalorder %s18, 0
      %p134 = por %p132, %p133
      %p135 = scmp.le.s32.totalorder 1, %s12
      %p136 = scmp.lt.s32.totalorder %s12, 9
      %p137 = pnand %p135, %p136
      %p138 = pneg %p137
      // Predicated region
      $region9: #{tpu_custom_call.1} parent=5 // pred_check
        _
      $region10: #{tpu_custom_call.1} parent=5 // pred_check_branch
        %140 = sbr.rel (%p137) target = $region12
      $region11: #{tpu_custom_call.1} parent=5 // pred_region
        %s141 = ssub.s32 %s12, 1
        // Predicated region
        $region13: #{tpu_custom_call.1} parent=11 // pred_check
          %p142 = pneg %p73
        $region14: #{tpu_custom_call.1} parent=11 // pred_check_branch
          %144 = sbr.rel (%p142) target = $region16
        $region15: #{tpu_custom_call.1} parent=11 // pred_region
          _
        $region16: #{tpu_custom_call.1} parent=11 // pred_fallthru
          _
        // Predicated region
        $region17: #{tpu_custom_call.1} parent=11 // pred_check
          %p145 = pneg %p99
        $region18: #{tpu_custom_call.1} parent=11 // pred_check_branch
          %147 = sbr.rel (%p145) target = $region20
        $region19: #{tpu_custom_call.1} parent=11 // pred_region
          %p148 = scmp.lt.s32.totalorder %s22, 0
          %s149 = scalar_select %p148, %s22, 0
          %s150 = smul.addr %s149, 4
          %s151 = scalar_lea.vmem %s2, %s150
        $region20: #{tpu_custom_call.1} parent=11 // pred_fallthru
          _
      $region12: #{tpu_custom_call.1} parent=5 // pred_fallthru
        _
      %p152 = scmp.lt.s32.totalorder %s12, 8
      // Predicated region
      $region21: #{tpu_custom_call.1} parent=5 // pred_check
        %p153 = pneg %p152
      $region22: #{tpu_custom_call.1} parent=5 // pred_check_branch
        %155 = sbr.rel (%p153) target = $region24
      $region23: #{tpu_custom_call.1} parent=5 // pred_region
        // Predicated region
        $region25: #{tpu_custom_call.1} parent=23 // pred_check
          %p156 = pneg %p46
        $region26: #{tpu_custom_call.1} parent=23 // pred_check_branch
          %158 = sbr.rel (%p156) target = $region28
        $region27: #{tpu_custom_call.1} parent=23 // pred_region
          %s159 = smul.u32 5, %s19
          %s160 = ssub.s32 38, %s159
          %p161 = scmp.lt.s32.totalorder %s160, 5
          %s162 = scalar_select %p161, %s160, 5
          %s163 = smul.u32 8, %s162
          %p164 = scmp.lt.s32.totalorder %s159, 37
          %s165 = scalar_select %p164, %s159, 37
          %p166 = scmp.lt.s32.totalorder %s20, 0
          %s167 = scalar_select %p166, %s20, 0
          %s168 = sadd.s32 %s167, %s165
          %s169 = smul.addr %s168, 8
          %s170 = scalar_lea.vmem %s0, %s169
          %s171 = smul.u32 5, %s19
          %s172 = ssub.s32 38, %s171
          %p173 = scmp.lt.s32.totalorder %s172, 5
          %s174 = scalar_select %p173, %s172, 5
          %s175 = smul.u32 8, %s174
        $region28: #{tpu_custom_call.1} parent=23 // pred_fallthru
          _
      $region24: #{tpu_custom_call.1} parent=5 // pred_fallthru
        _
      %p176 = scmp.le.s32.totalorder 1, %s12
      %p177 = scmp.lt.s32.totalorder %s12, 9
      %p178 = pnand %p176, %p177
      %p179 = pneg %p178
      // Predicated region
      $region29: #{tpu_custom_call.1} parent=5 // pred_check
        _
      $region30: #{tpu_custom_call.1} parent=5 // pred_check_branch
        %181 = sbr.rel (%p178) target = $region32
      $region31: #{tpu_custom_call.1} parent=5 // pred_region
        %s182 = ssub.s32 %s12, 1
        %s183 = smul.u32 5, %s21
        %s184 = ssub.s32 38, %s183
        %p185 = scmp.lt.s32.totalorder %s184, 5
        %s186 = scalar_select %p185, %s184, 5
        %s187 = smul.u32 8, %s186
        %p188 = scmp.lt.s32.totalorder %s183, 37
        %s189 = scalar_select %p188, %s183, 37
        %p190 = scmp.lt.s32.totalorder %s22, 0
        %s191 = scalar_select %p190, %s22, 0
        %s192 = sadd.s32 %s191, %s189
        %s193 = smul.addr %s192, 8
        %s194 = scalar_lea.vmem %s0, %s193
        %p195 = pneg %p52
        %p196 = pneg %p49
        %p197 = pneg %p73
        %p198 = pneg %p70
        %p199 = scmp.lt.s32.totalorder %s22, 0
        %s200 = scalar_select %p199, %s22, 0
        %s201 = smul.addr %s200, 4
        %s202 = scalar_lea.vmem %s2, %s201
        %p203 = pneg %p99
        %p204 = pneg %p96
        %p205 = pneg %p127
        %p206 = pneg %p124
        %s207 = sand.u32 %s114, 1
        %s208 = scalar_lea.sflag [#allocation3], %s207
        %s209 = sand.u32 %s114, 1
        %s210 = smul.addr %s209, 40
        %s211 = scalar_lea.vmem [#allocation2], %s210
        %s212 = smul.u32 5, %s21
        %s213 = ssub.s32 38, %s212
        %p214 = scmp.lt.s32.totalorder %s213, 5
        %s215 = scalar_select %p214, %s213, 5
        %s216 = smul.u32 8, %s215
        %p217 = scmp.lt.s32.totalorder %s212, 37
        %s218 = scalar_select %p217, %s212, 37
        %p219 = scmp.lt.s32.totalorder %s22, 0
        %s220 = scalar_select %p219, %s22, 0
        %s221 = sadd.s32 %s220, %s218
        %s222 = smul.addr %s221, 8
        %s223 = scalar_lea.vmem %s0, %s222
        %s224 = smul.u32 5, %s21
        %s225 = ssub.s32 38, %s224
        %p226 = scmp.lt.s32.totalorder %s225, 5
        %s227 = scalar_select %p226, %s225, 5
        %s228 = smul.u32 8, %s227
        %p229 = scmp.lt.s32.totalorder %s22, 0
        %s230 = scalar_select %p229, %s22, 0
        %s231 = smul.addr %s230, 4
        %s232 = scalar_lea.vmem %s2, %s231
        %s233 = smul.u32 5, %s21
        %s234 = ssub.s32 38, %s233
        %p235 = scmp.lt.s32.totalorder %s234, 5
        %s236 = scalar_select %p235, %s234, 5
        %s237 = smul.u32 8, %s236
        %v239 = vld [vmem:[%s223] sm:$0xff]
        %v240 = vld [vmem:[%s223 + $0x8] sm:$0xff]
        %v241 = vld [vmem:[%s223 + $0x10] sm:$0xff]
        %v242 = vld [vmem:[%s223 + $0x18] sm:$0xff]
        %v243 = vld [vmem:[%s223 + $0x20] sm:$0xff]
        %v244 = vpack.c.bf16 %v239, %v239
        %v245 = vpack.c.bf16 %v240, %v240
        %v246 = vpack.c.bf16 %v241, %v241
        %v247 = vpack.c.bf16 %v242, %v242
        %v248 = vpack.c.bf16 %v243, %v243
        %v249 = vunpack.c.l.bf16 %v244
        %v250 = vunpack.c.l.bf16 %v245
        %v251 = vunpack.c.l.bf16 %v246
        %v252 = vunpack.c.l.bf16 %v247
        %v253 = vunpack.c.l.bf16 %v248
        %v254 = vsub.f32 %v239, %v249
        %v255 = vsub.f32 %v240, %v250
        %v256 = vsub.f32 %v241, %v251
        %v257 = vsub.f32 %v242, %v252
        %v258 = vsub.f32 %v243, %v253
        %v259 = vpack.c.bf16 %v254, %v254
        %v260 = vpack.c.bf16 %v255, %v255
        %v261 = vpack.c.bf16 %v256, %v256
        %v262 = vpack.c.bf16 %v257, %v257
        %v263 = vpack.c.bf16 %v258, %v258
        %v264 = vunpack.c.l.bf16 %v259
        %v265 = vunpack.c.l.bf16 %v260
        %v266 = vunpack.c.l.bf16 %v261
        %v267 = vunpack.c.l.bf16 %v262
        %v268 = vunpack.c.l.bf16 %v263
        %v269 = vsub.f32 %v254, %v264
        %v270 = vsub.f32 %v255, %v265
        %v271 = vsub.f32 %v256, %v266
        %v272 = vsub.f32 %v257, %v267
        %v273 = vsub.f32 %v258, %v268
        %v274 = vpack.c.bf16 %v269, %v269
        %v275 = vpack.c.bf16 %v270, %v270
        %v276 = vpack.c.bf16 %v271, %v271
        %v277 = vpack.c.bf16 %v272, %v272
        %v278 = vpack.c.bf16 %v273, %v273
        %v284 = vunpack.c.l.b16 %v244
        %v285 = vunpack.c.l.b16 %v245
        %v286 = vunpack.c.l.b16 %v246
        %v287 = vunpack.c.l.b16 %v247
        %v288 = vunpack.c.l.b16 %v248
        %v289 = vpack.c.b16 %v285, %v284
        %v290 = vpack.c.b16 %v287, %v286
        %v291 = vpack.c.b16 %v288, %v288
        %v297 = vunpack.c.l.b16 %v259
        %v298 = vunpack.c.l.b16 %v260
        %v299 = vunpack.c.l.b16 %v261
        %v300 = vunpack.c.l.b16 %v262
        %v301 = vunpack.c.l.b16 %v263
        %v302 = vpack.c.b16 %v298, %v297
        %v303 = vpack.c.b16 %v300, %v299
        %v304 = vpack.c.b16 %v301, %v301
        %305 = vrot.lane.b32.xlu0 %v302, 16
        %v306 = vpop.permute.xlu0 %305
        %307 = vrot.lane.b32.xlu0 %v303, 16
        %v308 = vpop.permute.xlu0 %307
        %309 = vrot.lane.b32.xlu0 %v304, 16
        %v310 = vpop.permute.xlu0 %309
        %v316 = vunpack.c.l.b16 %v274
        %v317 = vunpack.c.l.b16 %v275
        %v318 = vunpack.c.l.b16 %v276
        %v319 = vunpack.c.l.b16 %v277
        %v320 = vunpack.c.l.b16 %v278
        %v321 = vpack.c.b16 %v317, %v316
        %v322 = vpack.c.b16 %v319, %v318
        %v323 = vpack.c.b16 %v320, %v320
        %324 = vrot.lane.b32.xlu0 %v321, 32
        %v325 = vpop.permute.xlu0 %324
        %326 = vrot.lane.b32.xlu0 %v322, 32
        %v327 = vpop.permute.xlu0 %326
        %328 = vrot.lane.b32.xlu0 %v323, 32
        %v329 = vpop.permute.xlu0 %328
        %vm330 = vcmask 130048
        %v333 = vsel %vm330, %v289, %v306
        %v336 = vsel %vm330, %v290, %v308
        %v339 = vsel %vm330, %v291, %v310
        %vm340 = vcmask 261120
        %v342 = vsel %vm340, %v333, %v325
        %v344 = vsel %vm340, %v336, %v327
        %v346 = vsel %vm340, %v339, %v329
        %v347 = vld [vmem:[%s1] sm:$0xf]
        %v348 = vld [vmem:[%s1 + $0x4] sm:$0xf]
        %v349 = vld [vmem:[%s1 + $0x8] sm:$0xf]
        %v350 = vld [vmem:[%s1 + $0xc] sm:$0xf]
        %v351 = vld [vmem:[%s1 + $0x10] sm:$0xf]
        %v352 = vld [vmem:[%s1 + $0x14] sm:$0xf]
        %v359 = vunpack.c.l.b16 %v347
        %v360 = vunpack.c.l.b16 %v348
        %v361 = vunpack.c.l.b16 %v349
        %v362 = vunpack.c.l.b16 %v350
        %v363 = vunpack.c.l.b16 %v351
        %v364 = vunpack.c.l.b16 %v352
        %v365 = vpack.c.b16 %v360, %v359
        %v366 = vpack.c.b16 %v362, %v361
        %v367 = vpack.c.b16 %v364, %v363
        %vm371 = vcmask 392192
        %v372 = vsel %vm371, %v342, 0
        %v374 = vsel %vm371, %v344, 0
        %v376 = vsel %vm371, %v346, 0
        %378 = vmatpush.bf16.msra.mxu0 0
        %379 = vmatpush.bf16.msra.mxu0 0
        %380 = vmatpush.bf16.msra.mxu0 0
        %381 = vmatpush.bf16.msra.mxu0 0
        %382 = vmatpush.bf16.msra.mxu0 0
        %383 = vmatpush.bf16.msra.mxu0 %v367
        %384 = vmatpush.bf16.msra.mxu0 %v366
        %385 = vmatpush.bf16.msra.mxu0 %v365
        %386 = vmatmul.bf16.gmra.mxu0 %v372
        %v387 = vpop.f32.mrf.mxu0
        %v388 = vadd.f32 0.0, %v387
        %v389 = vpop.f32.mrf.mxu0
        %v390 = vadd.f32 0.0, %v389
        %391 = vmatmul.bf16.gmra.mxu0 %v374
        %v392 = vpop.f32.mrf.mxu0
        %v393 = vadd.f32 0.0, %v392
        %v394 = vpop.f32.mrf.mxu0
        %v395 = vadd.f32 0.0, %v394
        %396 = vmatmul.bf16.gmra.mxu0 %v376
        %v397 = vpop.f32.mrf.mxu0
        %v398 = vadd.f32 0.0, %v397
        %v399 = vpop.f32.mrf.mxu0
        %400 = vdwg.mxu0
        %v401 = vld [vmem:[%s232] sm:$0xf]
        %v402 = vperm.slane %v401, 0
        %v403 = vsub.f32 %v388, %v402
        %v404 = vsub.f32 %v390, %v402
        %v405 = vsub.f32 %v393, %v402
        %v406 = vsub.f32 %v395, %v402
        %v407 = vsub.f32 %v398, %v402
        %v408 = vperm.slane %v401, 1
        %v409 = vmul.f32 %v403, %v408
        %v410 = vmul.f32 %v404, %v408
        %v411 = vmul.f32 %v405, %v408
        %v412 = vmul.f32 %v406, %v408
        %v413 = vmul.f32 %v407, %v408
        %v414 = vperm.slane %v401, 2
        %v415 = vmin.f32 %v409, %v414
        %v416 = vmin.f32 %v410, %v414
        %v417 = vmin.f32 %v411, %v414
        %v418 = vmin.f32 %v412, %v414
        %v419 = vmin.f32 %v413, %v414
        %v420 = vperm.slane %v401, 3
        %v421 = vmax.f32 %v415, %v420
        %v422 = vmax.f32 %v416, %v420
        %v423 = vmax.f32 %v417, %v420
        %v424 = vmax.f32 %v418, %v420
        %v425 = vmax.f32 %v419, %v420
        %426 = vst [vmem:[%s211] sm:$0xff] %v421
        %427 = vst [vmem:[%s211 + $0x8] sm:$0xff] %v422
        %428 = vst [vmem:[%s211 + $0x10] sm:$0xff] %v423
        %429 = vst [vmem:[%s211 + $0x18] sm:$0xff] %v424
        %430 = vst [vmem:[%s211 + $0x20] sm:$0xff] %v425
        %s431 = sand.u32 %s114, 1
        %s432 = scalar_lea.sflag [#allocation3], %s431
        %s433 = sand.u32 %s114, 1
        %s434 = smul.addr %s433, 40
        %s435 = scalar_lea.vmem [#allocation2], %s434
        // Predicated region
        $region33: #{tpu_custom_call.1} parent=31 // pred_check
          %p436 = pneg %p124
        $region34: #{tpu_custom_call.1} parent=31 // pred_check_branch
          %438 = sbr.rel (%p436) target = $region36
        $region35: #{tpu_custom_call.1} parent=31 // pred_region
          %s439 = smul.u32 5, %s21
          %s440 = ssub.s32 38, %s439
          %p441 = scmp.lt.s32.totalorder %s440, 5
          %s442 = scalar_select %p441, %s440, 5
          %s443 = smul.u32 8, %s442
          %s444 = ssub.s32 40, %s443
          %s445 = sshll.u32 %s444, 4
          %446 = vsyncadd %s432, %s445
          %p447 = scmp.ne.s32.totalorder 0, %s443
          %s448 = sadd.s32 %s22, %s439
          %s449 = smul.addr %s448, 8
          %s450 = scalar_lea.hbm %s3, %s449
          %s451 = smul.u32 8, %s442
          %s452 = sshll.u32 %s435, 4
          %s453 = int_to_ptr.vmem [resolvable:$true] %s452
          %s454 = sshll.u32 %s450, 4
          %s455 = int_to_ptr.hbm [resolvable:$true] %s454
          %s456 = sshll.u32 %s451, 4
          %460 = dma.vmem_to_hbm [thread:$0]  (%p447), %s453, %s456, %s455, %s432, 128, 128, 8
        $region36: #{tpu_custom_call.1} parent=31 // pred_fallthru
          _
      $region32: #{tpu_custom_call.1} parent=5 // pred_fallthru
        _
      %p461 = scmp.le.s32.totalorder 2, %s12
      // Predicated region
      $region37: #{tpu_custom_call.1} parent=5 // pred_check
        %p462 = pneg %p461
      $region38: #{tpu_custom_call.1} parent=5 // pred_check_branch
        %464 = sbr.rel (%p462) target = $region40
      $region39: #{tpu_custom_call.1} parent=5 // pred_region
        %s465 = ssub.s32 %s12, 2
        // Predicated region
        $region41: #{tpu_custom_call.1} parent=39 // pred_check
          %p466 = pneg %p130
        $region42: #{tpu_custom_call.1} parent=39 // pred_check_branch
          %468 = sbr.rel (%p466) target = $region44
        $region43: #{tpu_custom_call.1} parent=39 // pred_region
          %s469 = sand.u32 %s115, 1
          %s470 = scalar_lea.sflag [#allocation3], %s469
          %s471 = sand.u32 %s115, 1
          %s472 = smul.addr %s471, 40
          %s473 = scalar_lea.vmem [#allocation2], %s472
          %475 = dma.done %s470, 640
        $region44: #{tpu_custom_call.1} parent=39 // pred_fallthru
          _
      $region40: #{tpu_custom_call.1} parent=5 // pred_fallthru
        _
    $region6: #{tpu_custom_call.1} parent=1 // loop_footer
      %s16 = sadd.s32 1, %s12
    $region7: #{tpu_custom_call.1} parent=1 // loop_footer_branch
      %11 = sbr.rel target = $region3
    $region8: #{tpu_custom_call.1} parent=1 // loop_exit
      _
    %476 = vsyncpa [#allocation3], 1
    %s477 = scalar_lea.sflag [#allocation3], 1
    %478 = vsyncpa %s477, 1

</llo_original>
